<compile_context>
chip_gen: v7x
topology: tpu7x:2x2x1
jax: 0.10.0
libtpu: 0.0.40
codegen_flags: <defaults>
</compile_context>

<pallas_src>
import functools

import jax
import jax.numpy as jnp
from jax.experimental import pallas as pl
from jax.experimental.pallas import tpu as pltpu

INPUT_SIZE = 60
HIDDEN1 = 120
HIDDEN2 = 40
HIDDEN3 = 20
OUTPUT_SIZE = 1

MIN_TILE = 16               # native bf16 sublane tile is (16, 128)
DEFAULT_BATCH_TILE = 2048   # amortizes the ~0.35 us per-grid-step overhead


def _round_up(x, m):
    return ((x + m - 1) // m) * m


def _epilogue_dtype():
    """bf16 bias/ReLU epilogue on bf16-native VPUs (v6e/v7x); f32 elsewhere (v5e)."""
    try:
        kind = jax.devices()[0].device_kind.lower()
    except Exception:
        return jnp.float32
    if "v6" in kind or "v7" in kind:
        return jnp.bfloat16
    return jnp.float32


def dqn_kernel(x_ref,
               w1_ref, b1_ref,
               w2_ref, b2_ref,
               w3_ref, b3_ref,
               w4_ref, b4_ref,
               o_ref, *, epi_dtype):
    # Whole MLP fused: 3 MXU matmuls (bf16 operands, f32 accumulation), bias/ReLU
    # epilogue in epi_dtype, then the 20->1 head as a VPU multiply + lane reduce.
    # x arrives f32 in HBM; the bf16 cast for the MXU happens here (VPU, hidden
    # under the activation DMA) instead of as a separate XLA pass in the wrapper.
    x = x_ref[...].astype(jnp.bfloat16)                                   # (TB, 60)
    h = jnp.dot(x, w1_ref[...], preferred_element_type=jnp.float32)
    h = jnp.maximum(h.astype(epi_dtype) + b1_ref[...], 0).astype(jnp.bfloat16)
    h = jnp.dot(h, w2_ref[...], preferred_element_type=jnp.float32)
    h = jnp.maximum(h.astype(epi_dtype) + b2_ref[...], 0).astype(jnp.bfloat16)
    h = jnp.dot(h, w3_ref[...], preferred_element_type=jnp.float32)
    h = jnp.maximum(h.astype(epi_dtype) + b3_ref[...], 0)                 # (TB, 20)
    # Final 20 -> 1 layer: f32 broadcast-multiply + lane reduce (avoids N=1 MXU pass).
    out = jnp.sum(h.astype(jnp.float32) * w4_ref[...], axis=-1, keepdims=True)
    out = out + b4_ref[...]
    o_ref[...] = out.astype(o_ref.dtype)


@functools.partial(jax.jit, static_argnames=("tb_max", "epi_dtype"))
def _dqn_forward(x, params, *, tb_max, epi_dtype):
    batch = x.shape[0]

    # Tile selection:
    #  * at most tb_max rows per tile,
    #  * at least 2 grid steps when the batch allows it (v7x megacore sharding),
    #  * 16-aligned (bf16 sublane packing) and sized to minimize the ragged tail;
    #    the last block is partial (masked output writes), no wrapper-side pad.
    nt = max(pl.cdiv(batch, tb_max), 2 if batch >= 2 * MIN_TILE else 1)
    tb = min(_round_up(pl.cdiv(batch, nt), MIN_TILE), _round_up(batch, 8))
    grid = (pl.cdiv(batch, tb),)

    # bf16 operands for the MXU; biases in the epilogue dtype; the head stays f32.
    w1 = params["w1"].astype(jnp.bfloat16)
    w2 = params["w2"].astype(jnp.bfloat16)
    w3 = params["w3"].astype(jnp.bfloat16)
    w4 = params["w4"].reshape(1, HIDDEN3).astype(jnp.float32)  # (20,1) -> (1,20)
    b1 = params["b1"].astype(epi_dtype)
    b2 = params["b2"].astype(epi_dtype)
    b3 = params["b3"].astype(epi_dtype)
    b4 = params["b4"].astype(jnp.float32)

    def full(shape):
        # Weights/biases: same block every step -> resident across the whole grid.
        return pl.BlockSpec(shape, lambda i: (0, 0))

    in_specs = [
        pl.BlockSpec((tb, INPUT_SIZE), lambda i: (i, 0)),   # batch-tiled f32 x
        full((INPUT_SIZE, HIDDEN1)), full((1, HIDDEN1)),
        full((HIDDEN1, HIDDEN2)),    full((1, HIDDEN2)),
        full((HIDDEN2, HIDDEN3)),    full((1, HIDDEN3)),
        full((1, HIDDEN3)),          full((1, OUTPUT_SIZE)),
    ]
    out_spec = pl.BlockSpec((tb, OUTPUT_SIZE), lambda i: (i, 0))
    # TODO(synk): optional v5e-only tweak (profile-gated): lane-dense (1, tb)
    # output layout to turn the narrow masked vst.msk stores into unmasked vst.

    work_rows = grid[0] * tb
    flops = 2 * work_rows * (INPUT_SIZE * HIDDEN1 + HIDDEN1 * HIDDEN2
                             + HIDDEN2 * HIDDEN3 + HIDDEN3 * OUTPUT_SIZE)
    weight_bytes = (2 * (INPUT_SIZE * HIDDEN1 + HIDDEN1 * HIDDEN2 + HIDDEN2 * HIDDEN3)
                    + 4 * HIDDEN3 * OUTPUT_SIZE
                    + 4 * (HIDDEN1 + HIDDEN2 + HIDDEN3 + OUTPUT_SIZE))
    bytes_accessed = batch * INPUT_SIZE * 4 + weight_bytes + batch * OUTPUT_SIZE * 4

    # Per-step VMEM (lane-padded to 128): double-buffered x/out blocks plus the
    # f32/bf16 intermediates come to ~5-6 KB per tile row; give headroom so the
    # large, overhead-amortizing tiles also compile on v5e (16 MiB default limit)
    # while staying well under v7x's 64 MiB physical VMEM.
    vmem_limit = int(min(max(tb * 6 * 1024 + (2 << 20), 32 << 20), 56 << 20))

    return pl.pallas_call(
        functools.partial(dqn_kernel, epi_dtype=epi_dtype),
        out_shape=jax.ShapeDtypeStruct((batch, OUTPUT_SIZE), jnp.float32),
        grid=grid,
        in_specs=in_specs,
        out_specs=out_spec,
        compiler_params=pltpu.CompilerParams(
            dimension_semantics=("parallel",),   # shards batch across v7x's 2 TCs
            vmem_limit_bytes=vmem_limit,
        ),
        cost_estimate=pl.CostEstimate(
            flops=flops, transcendentals=0, bytes_accessed=bytes_accessed),
    )(x, w1, b1, w2, b2, w3, b3, w4, b4)


def dqn_forward(x, params, *, tb_max=DEFAULT_BATCH_TILE):
    """x: (B, INPUT_SIZE). params: dict of (in,out) weights + (1,out) biases."""
    return _dqn_forward(x.astype(jnp.float32), params, tb_max=tb_max,
                        epi_dtype=_epilogue_dtype())


def init_params(key):
    """Deterministic PyTorch-style init: U(-1/sqrt(fan_in), 1/sqrt(fan_in))."""
    dims = [(INPUT_SIZE, HIDDEN1), (HIDDEN1, HIDDEN2),
            (HIDDEN2, HIDDEN3), (HIDDEN3, OUTPUT_SIZE)]
    params = {}
    keys = jax.random.split(key, 2 * len(dims))
    for i, (fan_in, fan_out) in enumerate(dims):
        bound = 1.0 / jnp.sqrt(jnp.float32(fan_in))
        # stored as (in, out) == transpose of PyTorch's (out, in) weight
        params[f"w{i+1}"] = jax.random.uniform(
            keys[2 * i], (fan_in, fan_out), jnp.float32, -bound, bound)
        params[f"b{i+1}"] = jax.random.uniform(
            keys[2 * i + 1], (1, fan_out), jnp.float32, -bound, bound)
    return params


def dqn_reference(x, params):
    h = jnp.maximum(x @ params["w1"] + params["b1"], 0.0)
    h = jnp.maximum(h @ params["w2"] + params["b2"], 0.0)
    h = jnp.maximum(h @ params["w3"] + params["b3"], 0.0)
    return h @ params["w4"] + params["b4"]


if __name__ == "__main__":
    key = jax.random.PRNGKey(0)
    pkey, xkey, xkey2 = jax.random.split(key, 3)
    params = init_params(pkey)

    # Small batch (single grid step, tile == batch).
    batch = 8
    x = jax.random.normal(xkey, (batch, INPUT_SIZE), jnp.float32)
    out = jax.block_until_ready(dqn_forward(x, params))
    ref = dqn_reference(x, params)
    assert out.shape == (batch, OUTPUT_SIZE)
    # bf16 MXU operands / bf16 epilogue with f32 accumulation -> relaxed tolerance.
    assert jnp.allclose(out, ref, atol=5e-2, rtol=5e-2)

    # Exercise a multi-step grid + the ragged (partial) last block.
    batch2 = 200
    x2 = jax.random.normal(xkey2, (batch2, INPUT_SIZE), jnp.float32)
    out2 = jax.block_until_ready(dqn_forward(x2, params, tb_max=64))
    ref2 = dqn_reference(x2, params)
    assert out2.shape == (batch2, OUTPUT_SIZE)
    assert jnp.allclose(out2, ref2, atol=5e-2, rtol=5e-2)

    print("KERNEL_OK")
</pallas_src>

<mosaic_0001>
module attributes {stable_mosaic.version = 11 : i64} {
  func.func @dqn_kernel(%arg0: i32, %arg1: memref<8x60xf32, #tpu.memory_space<vmem>>, %arg2: memref<60x120xbf16, #tpu.memory_space<vmem>>, %arg3: memref<1x120xf32, #tpu.memory_space<vmem>>, %arg4: memref<120x40xbf16, #tpu.memory_space<vmem>>, %arg5: memref<1x40xf32, #tpu.memory_space<vmem>>, %arg6: memref<40x20xbf16, #tpu.memory_space<vmem>>, %arg7: memref<1x20xf32, #tpu.memory_space<vmem>>, %arg8: memref<1x20xf32, #tpu.memory_space<vmem>>, %arg9: memref<1x1xf32, #tpu.memory_space<vmem>>, %arg10: memref<8x1xf32, #tpu.memory_space<vmem>>) attributes {dimension_semantics = [#tpu.dimension_semantics<parallel>], iteration_bounds = array<i64: 1>, scalar_prefetch = 0 : i64, scratch_operands = 0 : i64, tpu.core_type = #tpu.core_type<tc>, window_params = [{transform_indices = @transform_0, window_bounds = array<i64: 8, 60>}, {pipeline_mode = #tpu.pipeline_mode<synchronous>, transform_indices = @transform_1, window_bounds = array<i64: 60, 120>}, {pipeline_mode = #tpu.pipeline_mode<synchronous>, transform_indices = @transform_2, window_bounds = array<i64: 1, 120>}, {pipeline_mode = #tpu.pipeline_mode<synchronous>, transform_indices = @transform_3, window_bounds = array<i64: 120, 40>}, {pipeline_mode = #tpu.pipeline_mode<synchronous>, transform_indices = @transform_4, window_bounds = array<i64: 1, 40>}, {pipeline_mode = #tpu.pipeline_mode<synchronous>, transform_indices = @transform_5, window_bounds = array<i64: 40, 20>}, {pipeline_mode = #tpu.pipeline_mode<synchronous>, transform_indices = @transform_6, window_bounds = array<i64: 1, 20>}, {pipeline_mode = #tpu.pipeline_mode<synchronous>, transform_indices = @transform_7, window_bounds = array<i64: 1, 20>}, {pipeline_mode = #tpu.pipeline_mode<synchronous>, transform_indices = @transform_8, window_bounds = array<i64: 1, 1>}, {transform_indices = @transform_9, window_bounds = array<i64: 8, 1>}]} {
    %c0 = arith.constant 0 : index
    %c0_0 = arith.constant 0 : index
    %0 = vector.load %arg1[%c0, %c0_0] : memref<8x60xf32, #tpu.memory_space<vmem>>, vector<8x60xf32>
    %1 = arith.truncf %0 : vector<8x60xf32> to vector<8x60xbf16>
    %c0_1 = arith.constant 0 : index
    %c0_2 = arith.constant 0 : index
    %2 = vector.load %arg2[%c0_1, %c0_2] : memref<60x120xbf16, #tpu.memory_space<vmem>>, vector<60x120xbf16>
    %cst = arith.constant dense<0.000000e+00> : vector<8x120xf32>
    %3 = tpu.matmul %1, %2, %cst {dimension_numbers = #tpu.dot_dimension_numbers<[1], [0], [0], [1], [0, 0, 1, 1], [], []>} : vector<8x60xbf16>, vector<60x120xbf16>, vector<8x120xf32> -> vector<8x120xf32>
    %c0_3 = arith.constant 0 : index
    %c0_4 = arith.constant 0 : index
    %4 = vector.load %arg3[%c0_3, %c0_4] : memref<1x120xf32, #tpu.memory_space<vmem>>, vector<1x120xf32>
    %5 = vector.broadcast %4 : vector<1x120xf32> to vector<8x120xf32>
    %6 = arith.addf %3, %5 : vector<8x120xf32>
    %cst_5 = arith.constant 0.000000e+00 : f32
    %7 = vector.broadcast %cst_5 : f32 to vector<8x120xf32>
    %8 = arith.maximumf %6, %7 : vector<8x120xf32>
    %9 = arith.truncf %8 : vector<8x120xf32> to vector<8x120xbf16>
    %c0_6 = arith.constant 0 : index
    %c0_7 = arith.constant 0 : index
    %10 = vector.load %arg4[%c0_6, %c0_7] : memref<120x40xbf16, #tpu.memory_space<vmem>>, vector<120x40xbf16>
    %cst_8 = arith.constant dense<0.000000e+00> : vector<8x40xf32>
    %11 = tpu.matmul %9, %10, %cst_8 {dimension_numbers = #tpu.dot_dimension_numbers<[1], [0], [0], [1], [0, 0, 1, 1], [], []>} : vector<8x120xbf16>, vector<120x40xbf16>, vector<8x40xf32> -> vector<8x40xf32>
    %c0_9 = arith.constant 0 : index
    %c0_10 = arith.constant 0 : index
    %12 = vector.load %arg5[%c0_9, %c0_10] : memref<1x40xf32, #tpu.memory_space<vmem>>, vector<1x40xf32>
    %13 = vector.broadcast %12 : vector<1x40xf32> to vector<8x40xf32>
    %14 = arith.addf %11, %13 : vector<8x40xf32>
    %cst_11 = arith.constant 0.000000e+00 : f32
    %15 = vector.broadcast %cst_11 : f32 to vector<8x40xf32>
    %16 = arith.maximumf %14, %15 : vector<8x40xf32>
    %17 = arith.truncf %16 : vector<8x40xf32> to vector<8x40xbf16>
    %c0_12 = arith.constant 0 : index
    %c0_13 = arith.constant 0 : index
    %18 = vector.load %arg6[%c0_12, %c0_13] : memref<40x20xbf16, #tpu.memory_space<vmem>>, vector<40x20xbf16>
    %cst_14 = arith.constant dense<0.000000e+00> : vector<8x20xf32>
    %19 = tpu.matmul %17, %18, %cst_14 {dimension_numbers = #tpu.dot_dimension_numbers<[1], [0], [0], [1], [0, 0, 1, 1], [], []>} : vector<8x40xbf16>, vector<40x20xbf16>, vector<8x20xf32> -> vector<8x20xf32>
    %c0_15 = arith.constant 0 : index
    %c0_16 = arith.constant 0 : index
    %20 = vector.load %arg7[%c0_15, %c0_16] : memref<1x20xf32, #tpu.memory_space<vmem>>, vector<1x20xf32>
    %21 = vector.broadcast %20 : vector<1x20xf32> to vector<8x20xf32>
    %22 = arith.addf %19, %21 : vector<8x20xf32>
    %cst_17 = arith.constant 0.000000e+00 : f32
    %23 = vector.broadcast %cst_17 : f32 to vector<8x20xf32>
    %24 = arith.maximumf %22, %23 : vector<8x20xf32>
    %c0_18 = arith.constant 0 : index
    %c0_19 = arith.constant 0 : index
    %25 = vector.load %arg8[%c0_18, %c0_19] : memref<1x20xf32, #tpu.memory_space<vmem>>, vector<1x20xf32>
    %26 = vector.broadcast %25 : vector<1x20xf32> to vector<8x20xf32>
    %27 = arith.mulf %24, %26 : vector<8x20xf32>
    %cst_20 = arith.constant dense<0.000000e+00> : vector<8xf32>
    %28 = vector.multi_reduction <add>, %27, %cst_20 [1] : vector<8x20xf32> to vector<8xf32>
    %29 = vector.shape_cast %28 : vector<8xf32> to vector<8x1xf32>
    %c0_21 = arith.constant 0 : index
    %c0_22 = arith.constant 0 : index
    %30 = vector.load %arg9[%c0_21, %c0_22] : memref<1x1xf32, #tpu.memory_space<vmem>>, vector<1x1xf32>
    %31 = vector.broadcast %30 : vector<1x1xf32> to vector<8x1xf32>
    %32 = arith.addf %29, %31 : vector<8x1xf32>
    %c0_23 = arith.constant 0 : index
    %c0_24 = arith.constant 0 : index
    %33 = vector.load %arg10[%c0_23, %c0_24] : memref<8x1xf32, #tpu.memory_space<vmem>>, vector<8x1xf32>
    tpu.vector_store %arg10[%c0_23, %c0_24], %32 {strides = array<i32>} : memref<8x1xf32, #tpu.memory_space<vmem>>, vector<8x1xf32>,
    return
  }
  func.func @transform_0(%arg0: i32) -> (i32, i32) {
    %c0_i32 = arith.constant 0 : i32
    %c0_i32_0 = arith.constant 0 : i32
    return %arg0, %c0_i32 : i32, i32
  }
  func.func @transform_1(%arg0: i32) -> (i32, i32) {
    %c0_i32 = arith.constant 0 : i32
    %c0_i32_0 = arith.constant 0 : i32
    %c0_i32_1 = arith.constant 0 : i32
    return %c0_i32, %c0_i32_0 : i32, i32
  }
  func.func @transform_2(%arg0: i32) -> (i32, i32) {
    %c0_i32 = arith.constant 0 : i32
    %c0_i32_0 = arith.constant 0 : i32
    %c0_i32_1 = arith.constant 0 : i32
    return %c0_i32, %c0_i32_0 : i32, i32
  }
  func.func @transform_3(%arg0: i32) -> (i32, i32) {
    %c0_i32 = arith.constant 0 : i32
    %c0_i32_0 = arith.constant 0 : i32
    %c0_i32_1 = arith.constant 0 : i32
    return %c0_i32, %c0_i32_0 : i32, i32
  }
  func.func @transform_4(%arg0: i32) -> (i32, i32) {
    %c0_i32 = arith.constant 0 : i32
    %c0_i32_0 = arith.constant 0 : i32
    %c0_i32_1 = arith.constant 0 : i32
    return %c0_i32, %c0_i32_0 : i32, i32
  }
  func.func @transform_5(%arg0: i32) -> (i32, i32) {
    %c0_i32 = arith.constant 0 : i32
    %c0_i32_0 = arith.constant 0 : i32
    %c0_i32_1 = arith.constant 0 : i32
    return %c0_i32, %c0_i32_0 : i32, i32
  }
  func.func @transform_6(%arg0: i32) -> (i32, i32) {
    %c0_i32 = arith.constant 0 : i32
    %c0_i32_0 = arith.constant 0 : i32
    %c0_i32_1 = arith.constant 0 : i32
    return %c0_i32, %c0_i32_0 : i32, i32
  }
  func.func @transform_7(%arg0: i32) -> (i32, i32) {
    %c0_i32 = arith.constant 0 : i32
    %c0_i32_0 = arith.constant 0 : i32
    %c0_i32_1 = arith.constant 0 : i32
    return %c0_i32, %c0_i32_0 : i32, i32
  }
  func.func @transform_8(%arg0: i32) -> (i32, i32) {
    %c0_i32 = arith.constant 0 : i32
    %c0_i32_0 = arith.constant 0 : i32
    %c0_i32_1 = arith.constant 0 : i32
    return %c0_i32, %c0_i32_0 : i32, i32
  }
  func.func @transform_9(%arg0: i32) -> (i32, i32) {
    %c0_i32 = arith.constant 0 : i32
    %c0_i32_0 = arith.constant 0 : i32
    return %arg0, %c0_i32 : i32, i32
  }
}

</mosaic_0001>

<llo_original>
// kernel: _dqn_forward.1
$region0: #{_dqn_forward.1}
  #allocation0 [shape = 'u32[]', space=smem, size = 0x4, offset = 0x4, fixed_abs, tag = 'smem constant byte address 0x4 - core index']
  #allocation1 [shape = 'u32[144,128]{1,0:T(1,128)}', space=vmem, size = 0x12000, scoped, tag = 'internal scratch']
  #allocation2 [shape = 'f32[1,1]{1,0:T(1,128)S(1)}', space=vmem, size = 0x200, scoped, tag = 'scoped memory for _dqn_forward.1']
  %s0 = inlined_call_operand.vmem [shape: f32[8,60], index: 0, kind: input, shape index: {}]
  %s1 = inlined_call_operand.vmem [shape: bf16[60,120], index: 1, kind: input, shape index: {}]
  %s2 = inlined_call_operand.vmem [shape: f32[1,120], index: 2, kind: input, shape index: {}]
  %s3 = inlined_call_operand.vmem [shape: bf16[120,40], index: 3, kind: input, shape index: {}]
  %s4 = inlined_call_operand.vmem [shape: f32[1,40], index: 4, kind: input, shape index: {}]
  %s5 = inlined_call_operand.vmem [shape: bf16[40,20], index: 5, kind: input, shape index: {}]
  %s6 = inlined_call_operand.vmem [shape: f32[1,20], index: 6, kind: input, shape index: {}]
  %s7 = inlined_call_operand.vmem [shape: f32[1,20], index: 7, kind: input, shape index: {}]
  %s8 = inlined_call_operand.<no memory space> [shape: f32[1,1], index: 8, kind: input, shape index: {}]
  %s9 = inlined_call_operand.vmem [shape: f32[8,1], index: 9, kind: output, shape index: {}]
  %s10 = sld [smem:[#allocation0]]
  $region46: #{_dqn_forward.1} parent=0
    _
  %s12 = ssub.s32 1, %s10
  %s13 = scalar_select 0, %s12, %s10
  %v14 = vstv %s8
  %15 = vst [vmem:[#allocation2] sm:$0x1] %v14
  // Predicated region
  $region2: #{_dqn_forward.1} parent=0 // pred_check
    _
  $region3: #{_dqn_forward.1} parent=0 // pred_check_branch
    %17 = sbr.rel (0) target = $region5
  $region4: #{_dqn_forward.1} parent=0 // pred_region
    _
  $region5: #{_dqn_forward.1} parent=0 // pred_fallthru
    _
  // Predicated region
  $region6: #{_dqn_forward.1} parent=0 // pred_check
    _
  $region7: #{_dqn_forward.1} parent=0 // pred_check_branch
    %19 = sbr.rel (0) target = $region9
  $region8: #{_dqn_forward.1} parent=0 // pred_region
    _
  $region9: #{_dqn_forward.1} parent=0 // pred_fallthru
    _
  // Predicated region
  $region10: #{_dqn_forward.1} parent=0 // pred_check
    _
  $region11: #{_dqn_forward.1} parent=0 // pred_check_branch
    %21 = sbr.rel (0) target = $region13
  $region12: #{_dqn_forward.1} parent=0 // pred_region
    _
  $region13: #{_dqn_forward.1} parent=0 // pred_fallthru
    _
  // Predicated region
  $region14: #{_dqn_forward.1} parent=0 // pred_check
    _
  $region15: #{_dqn_forward.1} parent=0 // pred_check_branch
    %23 = sbr.rel (0) target = $region17
  $region16: #{_dqn_forward.1} parent=0 // pred_region
    _
  $region17: #{_dqn_forward.1} parent=0 // pred_fallthru
    _
  // Predicated region
  $region18: #{_dqn_forward.1} parent=0 // pred_check
    _
  $region19: #{_dqn_forward.1} parent=0 // pred_check_branch
    %25 = sbr.rel (0) target = $region21
  $region20: #{_dqn_forward.1} parent=0 // pred_region
    _
  $region21: #{_dqn_forward.1} parent=0 // pred_fallthru
    _
  // Predicated region
  $region22: #{_dqn_forward.1} parent=0 // pred_check
    _
  $region23: #{_dqn_forward.1} parent=0 // pred_check_branch
    %27 = sbr.rel (0) target = $region25
  $region24: #{_dqn_forward.1} parent=0 // pred_region
    _
  $region25: #{_dqn_forward.1} parent=0 // pred_fallthru
    _
  // Predicated region
  $region26: #{_dqn_forward.1} parent=0 // pred_check
    _
  $region27: #{_dqn_forward.1} parent=0 // pred_check_branch
    %29 = sbr.rel (0) target = $region29
  $region28: #{_dqn_forward.1} parent=0 // pred_region
    _
  $region29: #{_dqn_forward.1} parent=0 // pred_fallthru
    _
  // Predicated region
  $region30: #{_dqn_forward.1} parent=0 // pred_check
    _
  $region31: #{_dqn_forward.1} parent=0 // pred_check_branch
    %31 = sbr.rel (0) target = $region33
  $region32: #{_dqn_forward.1} parent=0 // pred_region
    _
  $region33: #{_dqn_forward.1} parent=0 // pred_fallthru
    _
  // Predicated region
  $region34: #{_dqn_forward.1} parent=0 // pred_check
    _
  $region35: #{_dqn_forward.1} parent=0 // pred_check_branch
    %33 = sbr.rel (0) target = $region37
  $region36: #{_dqn_forward.1} parent=0 // pred_region
    _
  $region37: #{_dqn_forward.1} parent=0 // pred_fallthru
    _
  %v35 = vld [vmem:[%s0] sm:$0xff]
  %v36 = vpack.c.bf16 %v35, %v35
  %v37 = vld [vmem:[%s1] sm:$0xf]
  %v38 = vld [vmem:[%s1 + $0x4] sm:$0xf]
  %v39 = vld [vmem:[%s1 + $0x8] sm:$0xf]
  %v40 = vld [vmem:[%s1 + $0xc] sm:$0xf]
  %v41 = vld [vmem:[%s1 + $0x10] sm:$0xf]
  %v42 = vld [vmem:[%s1 + $0x14] sm:$0xf]
  %v43 = vld [vmem:[%s1 + $0x18] sm:$0xf]
  %v44 = vld [vmem:[%s1 + $0x1c] sm:$0x3]
  %v45 = vld [vmem:[%s2] sm:$0x1]
  %v47 = vlaneseq
  %v48 = vshrl.u32 %v47, 7
  %v49 = vsub.s32 0, %v48
  %v50 = vrot.slane %v45, %v49
  %v60 = vunpack.c.l.b16 %v37
  %v61 = vunpack.c.l.b16 %v38
  %v62 = vunpack.c.l.b16 %v39
  %v63 = vunpack.c.l.b16 %v40
  %v64 = vunpack.c.l.b16 %v41
  %v65 = vunpack.c.l.b16 %v42
  %v66 = vunpack.c.l.b16 %v43
  %v67 = vunpack.c.l.b16 %v44
  %v68 = vpack.c.b16 %v61, %v60
  %v69 = vpack.c.b16 %v63, %v62
  %v70 = vpack.c.b16 %v65, %v64
  %v71 = vpack.c.b16 %v67, %v66
  %vm75 = vcmask 490496
  %v77 = vsel %vm75, %v36, 0
  %vm79 = vcmask 1045504
  %v81 = vsel %vm79, %v71, 0
  %83 = vmatprep.subr.bf16.mxu0 0
  %84 = vmatpush1.bf16.msra.mxu0 %v68
  %85 = vmatprep.subr.bf16.mxu0 0
  %86 = vmatpush1.bf16.msra.mxu0 %v69
  %87 = vmatprep.subr.bf16.mxu0 0
  %88 = vmatpush1.bf16.msra.mxu0 %v70
  %89 = vmatprep.subr.bf16.mxu0 0
  %90 = vmatpush1.bf16.msra.mxu0 %v81
  %91 = vmatprep.subr.bf16.mxu0 0
  %92 = vmatpush1.bf16.msra.mxu0 0
  %93 = vmatprep.subr.bf16.mxu0 0
  %94 = vmatpush1.bf16.msra.mxu0 0
  %95 = vmatprep.subr.bf16.mxu0 0
  %96 = vmatpush1.bf16.msra.mxu0 0
  %97 = vmatprep.subr.bf16.mxu0 0
  %98 = vmatpush1.bf16.msra.mxu0 0
  %99 = vmatprep.subr.bf16.mxu0 0
  %100 = vmatpush1.bf16.msra.mxu0 0
  %101 = vmatprep.subr.bf16.mxu0 0
  %102 = vmatpush1.bf16.msra.mxu0 0
  %103 = vmatprep.subr.bf16.mxu0 0
  %104 = vmatpush1.bf16.msra.mxu0 0
  %105 = vmatprep.subr.bf16.mxu0 0
  %106 = vmatpush1.bf16.msra.mxu0 0
  %107 = vmatprep.subr.bf16.mxu0 0
  %108 = vmatpush1.bf16.msra.mxu0 0
  %109 = vmatprep.subr.bf16.mxu0 0
  %110 = vmatpush1.bf16.msra.mxu0 0
  %111 = vmatprep.subr.bf16.mxu0 0
  %112 = vmatpush1.bf16.msra.mxu0 0
  %113 = vmatprep.subr.bf16.mxu0 0
  %114 = vmatpush1.bf16.msra.mxu0 0
  %115 = vmatprep.mubr.bf16.mxu0 0
  %116 = vmatmul.mubr.bf16.gmra.mrb[0].mxu0 %v77
  %v117 = vpop.f32.mrb[0].mxu0
  %v118 = vadd.f32 %v50, %v117
  %v119 = vpop.f32.mrb[0].mxu0
  %v120 = vpop.f32.mrb[0].mxu0
  %v121 = vpop.f32.mrb[0].mxu0
  %122 = vdwg.mxu0
  %v123 = vmax.f32 %v118, 0.0
  %v124 = vpack.c.bf16 %v123, %v123
  %v125 = vld [vmem:[%s3] sm:$0xf]
  %v126 = vld [vmem:[%s3 + $0x4] sm:$0xf]
  %v127 = vld [vmem:[%s3 + $0x8] sm:$0xf]
  %v128 = vld [vmem:[%s3 + $0xc] sm:$0xf]
  %v129 = vld [vmem:[%s3 + $0x10] sm:$0xf]
  %v130 = vld [vmem:[%s3 + $0x14] sm:$0xf]
  %v131 = vld [vmem:[%s3 + $0x18] sm:$0xf]
  %v132 = vld [vmem:[%s3 + $0x1c] sm:$0xf]
  %v133 = vld [vmem:[%s3 + $0x20] sm:$0xf]
  %v134 = vld [vmem:[%s3 + $0x24] sm:$0xf]
  %v135 = vld [vmem:[%s3 + $0x28] sm:$0xf]
  %v136 = vld [vmem:[%s3 + $0x2c] sm:$0xf]
  %v137 = vld [vmem:[%s3 + $0x30] sm:$0xf]
  %v138 = vld [vmem:[%s3 + $0x34] sm:$0xf]
  %v139 = vld [vmem:[%s3 + $0x38] sm:$0xf]
  %v140 = vld [vmem:[%s4] sm:$0x1]
  %v142 = vlaneseq
  %v143 = vshrl.u32 %v142, 7
  %v144 = vsub.s32 0, %v143
  %v145 = vrot.slane %v140, %v144
  %v162 = vunpack.c.l.b16 %v125
  %v163 = vunpack.c.l.b16 %v126
  %v164 = vunpack.c.l.b16 %v127
  %v165 = vunpack.c.l.b16 %v128
  %v166 = vunpack.c.l.b16 %v129
  %v167 = vunpack.c.l.b16 %v130
  %v168 = vunpack.c.l.b16 %v131
  %v169 = vunpack.c.l.b16 %v132
  %v170 = vunpack.c.l.b16 %v133
  %v171 = vunpack.c.l.b16 %v134
  %v172 = vunpack.c.l.b16 %v135
  %v173 = vunpack.c.l.b16 %v136
  %v174 = vunpack.c.l.b16 %v137
  %v175 = vunpack.c.l.b16 %v138
  %v176 = vunpack.c.l.b16 %v139
  %v177 = vpack.c.b16 %v163, %v162
  %v178 = vpack.c.b16 %v165, %v164
  %v179 = vpack.c.b16 %v167, %v166
  %v180 = vpack.c.b16 %v169, %v168
  %v181 = vpack.c.b16 %v171, %v170
  %v182 = vpack.c.b16 %v173, %v172
  %v183 = vpack.c.b16 %v175, %v174
  %v184 = vpack.c.b16 %v176, %v176
  %vm192 = vcmask 982016
  %v194 = vsel %vm192, %v124, 0
  %vm196 = vcmask 1043456
  %v198 = vsel %vm196, %v184, 0
  %200 = vmatprep.subr.bf16.mxu0 0
  %201 = vmatpush1.bf16.msra.mxu0 %v177
  %202 = vmatprep.subr.bf16.mxu0 0
  %203 = vmatpush1.bf16.msra.mxu0 %v178
  %204 = vmatprep.subr.bf16.mxu0 0
  %205 = vmatpush1.bf16.msra.mxu0 %v179
  %206 = vmatprep.subr.bf16.mxu0 0
  %207 = vmatpush1.bf16.msra.mxu0 %v180
  %208 = vmatprep.subr.bf16.mxu0 0
  %209 = vmatpush1.bf16.msra.mxu0 %v181
  %210 = vmatprep.subr.bf16.mxu0 0
  %211 = vmatpush1.bf16.msra.mxu0 %v182
  %212 = vmatprep.subr.bf16.mxu0 0
  %213 = vmatpush1.bf16.msra.mxu0 %v183
  %214 = vmatprep.subr.bf16.mxu0 0
  %215 = vmatpush1.bf16.msra.mxu0 %v198
  %216 = vmatprep.subr.bf16.mxu0 0
  %217 = vmatpush1.bf16.msra.mxu0 0
  %218 = vmatprep.subr.bf16.mxu0 0
  %219 = vmatpush1.bf16.msra.mxu0 0
  %220 = vmatprep.subr.bf16.mxu0 0
  %221 = vmatpush1.bf16.msra.mxu0 0
  %222 = vmatprep.subr.bf16.mxu0 0
  %223 = vmatpush1.bf16.msra.mxu0 0
  %224 = vmatprep.subr.bf16.mxu0 0
  %225 = vmatpush1.bf16.msra.mxu0 0
  %226 = vmatprep.subr.bf16.mxu0 0
  %227 = vmatpush1.bf16.msra.mxu0 0
  %228 = vmatprep.subr.bf16.mxu0 0
  %229 = vmatpush1.bf16.msra.mxu0 0
  %230 = vmatprep.subr.bf16.mxu0 0
  %231 = vmatpush1.bf16.msra.mxu0 0
  %232 = vmatprep.mubr.bf16.mxu0 0
  %233 = vmatmul.mubr.bf16.gmra.mrb[0].mxu0 %v194
  %v234 = vpop.f32.mrb[0].mxu0
  %v235 = vadd.f32 %v145, %v234
  %v236 = vpop.f32.mrb[0].mxu0
  %v237 = vpop.f32.mrb[0].mxu0
  %v238 = vpop.f32.mrb[0].mxu0
  %239 = vdwg.mxu0
  %v240 = vmax.f32 %v235, 0.0
  %v241 = vpack.c.bf16 %v240, %v240
  %v242 = vld [vmem:[%s5] sm:$0xf]
  %v243 = vld [vmem:[%s5 + $0x4] sm:$0xf]
  %v244 = vld [vmem:[%s5 + $0x8] sm:$0xf]
  %v245 = vld [vmem:[%s5 + $0xc] sm:$0xf]
  %v246 = vld [vmem:[%s5 + $0x10] sm:$0xf]
  %v247 = vld [vmem:[%s6] sm:$0x1]
  %v249 = vlaneseq
  %v250 = vshrl.u32 %v249, 7
  %v251 = vsub.s32 0, %v250
  %v252 = vrot.slane %v247, %v251
  %v259 = vunpack.c.l.b16 %v242
  %v260 = vunpack.c.l.b16 %v243
  %v261 = vunpack.c.l.b16 %v244
  %v262 = vunpack.c.l.b16 %v245
  %v263 = vunpack.c.l.b16 %v246
  %v264 = vpack.c.b16 %v260, %v259
  %v265 = vpack.c.b16 %v262, %v261
  %v266 = vpack.c.b16 %v263, %v263
  %vm269 = vcmask 326656
  %v271 = vsel %vm269, %v241, 0
  %v274 = vsel %vm196, %v266, 0
  %276 = vmatprep.subr.bf16.mxu0 0
  %277 = vmatpush1.bf16.msra.mxu0 %v264
  %278 = vmatprep.subr.bf16.mxu0 0
  %279 = vmatpush1.bf16.msra.mxu0 %v265
  %280 = vmatprep.subr.bf16.mxu0 0
  %281 = vmatpush1.bf16.msra.mxu0 %v274
  %282 = vmatprep.subr.bf16.mxu0 0
  %283 = vmatpush1.bf16.msra.mxu0 0
  %284 = vmatprep.subr.bf16.mxu0 0
  %285 = vmatpush1.bf16.msra.mxu0 0
  %286 = vmatprep.subr.bf16.mxu0 0
  %287 = vmatpush1.bf16.msra.mxu0 0
  %288 = vmatprep.subr.bf16.mxu0 0
  %289 = vmatpush1.bf16.msra.mxu0 0
  %290 = vmatprep.subr.bf16.mxu0 0
  %291 = vmatpush1.bf16.msra.mxu0 0
  %292 = vmatprep.subr.bf16.mxu0 0
  %293 = vmatpush1.bf16.msra.mxu0 0
  %294 = vmatprep.subr.bf16.mxu0 0
  %295 = vmatpush1.bf16.msra.mxu0 0
  %296 = vmatprep.subr.bf16.mxu0 0
  %297 = vmatpush1.bf16.msra.mxu0 0
  %298 = vmatprep.subr.bf16.mxu0 0
  %299 = vmatpush1.bf16.msra.mxu0 0
  %300 = vmatprep.subr.bf16.mxu0 0
  %301 = vmatpush1.bf16.msra.mxu0 0
  %302 = vmatprep.subr.bf16.mxu0 0
  %303 = vmatpush1.bf16.msra.mxu0 0
  %304 = vmatprep.subr.bf16.mxu0 0
  %305 = vmatpush1.bf16.msra.mxu0 0
  %306 = vmatprep.subr.bf16.mxu0 0
  %307 = vmatpush1.bf16.msra.mxu0 0
  %308 = vmatprep.mubr.bf16.mxu0 0
  %309 = vmatmul.mubr.bf16.gmra.mrb[0].mxu0 %v271
  %v310 = vpop.f32.mrb[0].mxu0
  %v311 = vadd.f32 %v252, %v310
  %v312 = vpop.f32.mrb[0].mxu0
  %v313 = vpop.f32.mrb[0].mxu0
  %v314 = vpop.f32.mrb[0].mxu0
  %315 = vdwg.mxu0
  %v316 = vmax.f32 %v311, 0.0
  %v317 = vld [vmem:[%s7] sm:$0x1]
  %v319 = vlaneseq
  %v320 = vshrl.u32 %v319, 7
  %v321 = vsub.s32 0, %v320
  %v322 = vrot.slane %v317, %v321
  %v324 = vmul.f32 %v316, %v322
  %vm325 = vcmask 162816
  %v326 = vsel %vm325, %v324, 0.0
  %327 = vadd.xlane.f32.xlu0 %v326
  %v328 = vpop.xlane.xlu0 %327
  %v329 = vld [vmem:[#allocation2] sm:$0x1]
  %v331 = vlaneseq
  %v332 = vshrl.u32 %v331, 7
  %v333 = vsub.s32 0, %v332
  %v334 = vrot.slane %v329, %v333
  %v336 = vadd.f32 %v328, %v334
  %vm337 = vcmask 7168
  %338 = vst.msk [vmem:[%s9] sm:$0xff] %vm337, %v336
  // Predicated region
  $region38: #{_dqn_forward.1} parent=0 // pred_check
    _
  $region39: #{_dqn_forward.1} parent=0 // pred_check_branch
    %340 = sbr.rel (0) target = $region41
  $region40: #{_dqn_forward.1} parent=0 // pred_region
    _
  $region41: #{_dqn_forward.1} parent=0 // pred_fallthru
    _
  // Predicated region
  $region42: #{_dqn_forward.1} parent=0 // pred_check
    _
  $region43: #{_dqn_forward.1} parent=0 // pred_check_branch
    %342 = sbr.rel (0) target = $region45
  $region44: #{_dqn_forward.1} parent=0 // pred_region
    _
  $region45: #{_dqn_forward.1} parent=0 // pred_fallthru
    _

</llo_original>
